<compile_context>
chip_gen: v7x
topology: tpu7x:2x2x1
jax: 0.10.0
libtpu: 0.0.40
codegen_flags: <defaults>
</compile_context>

<pallas_src>
import functools

import jax
import jax.numpy as jnp
from jax import lax
from jax.experimental import pallas as pl
from jax.experimental.pallas import tpu as pltpu


def _round_up(x: int, m: int) -> int:
    return ((x + m - 1) // m) * m


def _linear_additive_kernel(ctrl_ref, pert_ref, w_ref, b_ref, out_ref):
    # (tm, n_perts) . (tn, n_perts), contracting n_perts on both -> (tm, tn),
    # accumulated in f32 on the MXU.  Consumes the nn.Linear weight in its
    # native (n_genes, n_perts) layout (no wrapper transpose).
    proj = lax.dot_general(
        pert_ref[...],
        w_ref[...],
        dimension_numbers=(((1,), (1,)), ((), ())),
        preferred_element_type=jnp.float32,
    )
    z = ctrl_ref[...] + proj + b_ref[...]  # bias (1, tn) broadcasts over batch
    # PyTorch F.softplus(beta=1, threshold=20): x if x > 20 else log1p(exp(x)).
    # Clamp before exp so the untaken branch never overflows (exp is EUP work,
    # essentially free alongside the VPU adds).
    safe = jnp.minimum(z, 20.0)
    out_ref[...] = jnp.where(z > 20.0, z, jnp.log1p(jnp.exp(safe))).astype(out_ref.dtype)


@functools.partial(jax.jit, static_argnames=("tm", "tn"))
def linear_additive_forward(control_input, perturbation, w_pert, b_pert,
                            *, tm: int = 256, tn: int = 1024):
    """LinearAdditive.forward.

    control_input: (B, n_genes) float32
    perturbation : (B, n_perts) float32 (one-hot rows in practice)
    w_pert       : (n_genes, n_perts) float32  -- nn.Linear(n_perts, n_genes).weight
    b_pert       : (n_genes,)  float32         -- nn.Linear bias
    returns      : (B, n_genes) float32
    """
    B, n_genes = control_input.shape
    n_perts = perturbation.shape[1]

    # Pick sublane/lane-aligned tile sizes no bigger than the (padded) problem.
    tm = min(tm, _round_up(B, 8))
    tn = min(tn, _round_up(n_genes, 128))
    B_pad = _round_up(B, tm)
    G_pad = _round_up(n_genes, tn)
    pad_b = B_pad - B
    pad_g = G_pad - n_genes

    # Zero-pad ragged shapes once per array so every tile is full and output
    # stores are unmasked lane-dense; padded rows/cols are sliced off after.
    ctrl = control_input
    pert = perturbation
    w = w_pert
    b = b_pert.reshape(1, n_genes)
    if pad_b or pad_g:
        ctrl = jnp.pad(ctrl, ((0, pad_b), (0, pad_g)))
    if pad_b:
        pert = jnp.pad(pert, ((0, pad_b), (0, 0)))
    if pad_g:
        w = jnp.pad(w, ((0, pad_g), (0, 0)))
        b = jnp.pad(b, ((0, 0), (0, pad_g)))

    grid = (B_pad // tm, G_pad // tn)  # genes innermost -> pert tile stays resident

    out = pl.pallas_call(
        _linear_additive_kernel,
        out_shape=jax.ShapeDtypeStruct((B_pad, G_pad), control_input.dtype),
        grid_spec=pltpu.PrefetchScalarGridSpec(
            num_scalar_prefetch=0,
            grid=grid,
            in_specs=[
                pl.BlockSpec((tm, tn), lambda i, j: (i, j)),        # control tile
                pl.BlockSpec((tm, n_perts), lambda i, j: (i, 0)),   # pert rows (reused over j)
                pl.BlockSpec((tn, n_perts), lambda i, j: (j, 0)),   # weight cols
                pl.BlockSpec((1, tn), lambda i, j: (0, j)),         # bias slice
            ],
            out_specs=pl.BlockSpec((tm, tn), lambda i, j: (i, j)),
        ),
        compiler_params=pltpu.CompilerParams(
            # No reduction axis -> both axes parallel (megacore sharding).
            dimension_semantics=("parallel", "parallel"),
            vmem_limit_bytes=64 * 1024 * 1024,
        ),
    )(ctrl, pert, w, b)

    if pad_b or pad_g:
        out = out[:B, :n_genes]
    return out


def _reference(control_input, perturbation, w_pert, b_pert):
    z = control_input + perturbation @ w_pert.T + b_pert[None, :]
    return jnp.where(z > 20.0, z, jnp.log1p(jnp.exp(jnp.minimum(z, 20.0))))


if __name__ == "__main__":
    key = jax.random.PRNGKey(0)
    B = 8            # batch size
    n_genes = 256    # encoder_input_dim
    n_perts = 16     # number of perturbation conditions

    k1, k2, k3, k4 = jax.random.split(key, 4)

    # Deterministic parameter init mimicking nn.Linear(n_perts, n_genes):
    # uniform(-1/sqrt(fan_in), 1/sqrt(fan_in)).
    bound = 1.0 / jnp.sqrt(jnp.float32(n_perts))
    w_pert = jax.random.uniform(k1, (n_genes, n_perts), jnp.float32, -bound, bound)
    b_pert = jax.random.uniform(k2, (n_genes,), jnp.float32, -bound, bound)

    # Example inputs: control expression (non-negative-ish) and one-hot perts.
    control_input = jax.random.uniform(k3, (B, n_genes), jnp.float32, 0.0, 2.0)
    pert_ids = jax.random.randint(k4, (B,), 0, n_perts)
    perturbation = jax.nn.one_hot(pert_ids, n_perts, dtype=jnp.float32)

    out = linear_additive_forward(control_input, perturbation, w_pert, b_pert)
    out = jax.block_until_ready(out)
    ref = _reference(control_input, perturbation, w_pert, b_pert)
    assert out.shape == (B, n_genes)
    assert jnp.allclose(out, ref, atol=1e-5, rtol=1e-5), "mismatch vs reference"

    # Ragged-shape check exercises the padding path (B not multiple of 8,
    # n_genes not multiple of 128).
    B2, G2 = 5, 200
    ctrl2 = control_input[:B2, :G2]
    pert2 = perturbation[:B2]
    w2 = w_pert[:G2]
    b2 = b_pert[:G2]
    out2 = jax.block_until_ready(
        linear_additive_forward(ctrl2, pert2, w2, b2))
    ref2 = _reference(ctrl2, pert2, w2, b2)
    assert out2.shape == (B2, G2)
    assert jnp.allclose(out2, ref2, atol=1e-5, rtol=1e-5), "ragged mismatch"

    print("KERNEL_OK")
</pallas_src>

<mosaic_0001>
module attributes {stable_mosaic.version = 11 : i64} {
  func.func @_linear_additive_kernel(%arg0: i32, %arg1: i32, %arg2: memref<8x256xf32, #tpu.memory_space<vmem>>, %arg3: memref<8x16xf32, #tpu.memory_space<vmem>>, %arg4: memref<256x16xf32, #tpu.memory_space<vmem>>, %arg5: memref<1x256xf32, #tpu.memory_space<vmem>>, %arg6: memref<8x256xf32, #tpu.memory_space<vmem>>) attributes {dimension_semantics = [#tpu.dimension_semantics<parallel>, #tpu.dimension_semantics<parallel>], iteration_bounds = array<i64: 1, 1>, scalar_prefetch = 0 : i64, scratch_operands = 0 : i64, tpu.core_type = #tpu.core_type<tc>, window_params = [{transform_indices = @transform_0, window_bounds = array<i64: 8, 256>}, {transform_indices = @transform_1, window_bounds = array<i64: 8, 16>}, {transform_indices = @transform_2, window_bounds = array<i64: 256, 16>}, {transform_indices = @transform_3, window_bounds = array<i64: 1, 256>}, {transform_indices = @transform_4, window_bounds = array<i64: 8, 256>}]} {
    %c0 = arith.constant 0 : index
    %c0_0 = arith.constant 0 : index
    %0 = vector.load %arg3[%c0, %c0_0] : memref<8x16xf32, #tpu.memory_space<vmem>>, vector<8x16xf32>
    %c0_1 = arith.constant 0 : index
    %c0_2 = arith.constant 0 : index
    %1 = vector.load %arg4[%c0_1, %c0_2] : memref<256x16xf32, #tpu.memory_space<vmem>>, vector<256x16xf32>
    %cst = arith.constant dense<0.000000e+00> : vector<8x256xf32>
    %2 = tpu.matmul %0, %1, %cst {dimension_numbers = #tpu.dot_dimension_numbers<[1], [1], [0], [0], [0, 0, 1, 0], [], []>} : vector<8x16xf32>, vector<256x16xf32>, vector<8x256xf32> -> vector<8x256xf32>
    %c0_3 = arith.constant 0 : index
    %c0_4 = arith.constant 0 : index
    %3 = vector.load %arg2[%c0_3, %c0_4] : memref<8x256xf32, #tpu.memory_space<vmem>>, vector<8x256xf32>
    %4 = arith.addf %3, %2 : vector<8x256xf32>
    %c0_5 = arith.constant 0 : index
    %c0_6 = arith.constant 0 : index
    %5 = vector.load %arg5[%c0_5, %c0_6] : memref<1x256xf32, #tpu.memory_space<vmem>>, vector<1x256xf32>
    %6 = vector.broadcast %5 : vector<1x256xf32> to vector<8x256xf32>
    %7 = arith.addf %4, %6 : vector<8x256xf32>
    %cst_7 = arith.constant 2.000000e+01 : f32
    %8 = vector.broadcast %cst_7 : f32 to vector<8x256xf32>
    %9 = arith.minimumf %7, %8 : vector<8x256xf32>
    %cst_8 = arith.constant 2.000000e+01 : f32
    %10 = vector.broadcast %cst_8 : f32 to vector<8x256xf32>
    %11 = arith.cmpf ogt, %7, %10 : vector<8x256xf32>
    %12 = math.exp %9 : vector<8x256xf32>
    %13 = math.log1p %12 : vector<8x256xf32>
    %14 = arith.select %11, %7, %13 : vector<8x256xi1>, vector<8x256xf32>
    %c0_9 = arith.constant 0 : index
    %c0_10 = arith.constant 0 : index
    %15 = vector.load %arg6[%c0_9, %c0_10] : memref<8x256xf32, #tpu.memory_space<vmem>>, vector<8x256xf32>
    tpu.vector_store %arg6[%c0_9, %c0_10], %14 {strides = array<i32>} : memref<8x256xf32, #tpu.memory_space<vmem>>, vector<8x256xf32>,
    return
  }
  func.func @transform_0(%arg0: i32, %arg1: i32) -> (i32, i32) {
    %c0_i32 = arith.constant 0 : i32
    return %arg0, %arg1 : i32, i32
  }
  func.func @transform_1(%arg0: i32, %arg1: i32) -> (i32, i32) {
    %c0_i32 = arith.constant 0 : i32
    %c0_i32_0 = arith.constant 0 : i32
    return %arg0, %c0_i32 : i32, i32
  }
  func.func @transform_2(%arg0: i32, %arg1: i32) -> (i32, i32) {
    %c0_i32 = arith.constant 0 : i32
    %c0_i32_0 = arith.constant 0 : i32
    return %arg1, %c0_i32 : i32, i32
  }
  func.func @transform_3(%arg0: i32, %arg1: i32) -> (i32, i32) {
    %c0_i32 = arith.constant 0 : i32
    %c0_i32_0 = arith.constant 0 : i32
    return %c0_i32, %arg1 : i32, i32
  }
  func.func @transform_4(%arg0: i32, %arg1: i32) -> (i32, i32) {
    %c0_i32 = arith.constant 0 : i32
    return %arg0, %arg1 : i32, i32
  }
}

</mosaic_0001>

<llo_original>
// kernel: linear_additive_forward.1
$region0: #{linear_additive_forward.1}
  #allocation0 [shape = 'u32[]', space=smem, size = 0x4, offset = 0x4, fixed_abs, tag = 'smem constant byte address 0x4 - core index']
  #allocation1 [shape = 'u32[144,128]{1,0:T(1,128)}', space=vmem, size = 0x12000, scoped, tag = 'internal scratch']
  %s0 = inlined_call_operand.hbm [shape: f32[8,256], index: 0, kind: input, shape index: {}]
  %s1 = inlined_call_operand.hbm [shape: f32[8,16], index: 1, kind: input, shape index: {}]
  %s2 = inlined_call_operand.hbm [shape: f32[256,16], index: 2, kind: input, shape index: {}]
  %s3 = inlined_call_operand.hbm [shape: f32[1,256], index: 3, kind: input, shape index: {}]
  %s4 = inlined_call_operand.hbm [shape: f32[8,256], index: 4, kind: output, shape index: {}]
  %s5 = sld [smem:[#allocation0]]
  $region42: #{linear_additive_forward.1} parent=0
    _
  %s7 = ssub.s32 1, %s5
  %s8 = scalar_select 0, %s7, %s5
  $region1: #{linear_additive_forward.1} parent=0
    #allocation2 [shape = 'u8[8192]{0}', space=vmem, size = 0x2000, scoped, tag = 'input window, operand 0, single buffered']
    #allocation3 [shape = 's32[1]{0}', space=sflag, size = 0x4, scoped, tag = 'scoped memory for linear_additive_forward.1']
    #allocation4 [shape = 's32[1]{0}', space=sflag, size = 0x4, scoped, tag = 'scoped memory for linear_additive_forward.1']
    #allocation5 [shape = 'u8[4096]{0}', space=vmem, size = 0x1000, scoped, tag = 'input window, operand 1, single buffered']
    #allocation6 [shape = 's32[1]{0}', space=sflag, size = 0x4, scoped, tag = 'scoped memory for linear_additive_forward.1']
    #allocation7 [shape = 'u8[131072]{0}', space=vmem, size = 0x20000, scoped, tag = 'input window, operand 2, single buffered']
    #allocation8 [shape = 'u8[1024]{0}', space=vmem, size = 0x400, scoped, tag = 'input window, operand 3, single buffered']
    #allocation9 [shape = 's32[1]{0}', space=sflag, size = 0x4, scoped, tag = 'scoped memory for linear_additive_forward.1']
    #allocation10 [shape = 'u8[8192]{0}', space=vmem, size = 0x2000, scoped, tag = 'output window, operand 0, single buffered']
    %9 = vsyncpa [#allocation3], 0
    %10 = vsyncpa [#allocation6], 0
    %11 = vsyncpa [#allocation9], 0
    %12 = vsyncpa [#allocation4], 0
    // Predicated region
    $region2: #{linear_additive_forward.1} parent=1 // pred_check
      _
    $region3: #{linear_additive_forward.1} parent=1 // pred_check_branch
      %14 = sbr.rel (0) target = $region5
    $region4: #{linear_additive_forward.1} parent=1 // pred_region
      %s16 = ssub.s32 256, 256
      %17 = vsyncadd [#allocation3], %s16
      %s19 = sshll.u32 [#allocation2], 4
      %s20 = int_to_ptr.vmem [resolvable:$true] %s19
      %22 = dma.hbm_to_vmem [thread:$0]  %s0, 256, %s20, [#allocation3]
    $region5: #{linear_additive_forward.1} parent=1 // pred_fallthru
      _
    // Predicated region
    $region6: #{linear_additive_forward.1} parent=1 // pred_check
      _
    $region7: #{linear_additive_forward.1} parent=1 // pred_check_branch
      %24 = sbr.rel (0) target = $region9
    $region8: #{linear_additive_forward.1} parent=1 // pred_region
      %s26 = ssub.s32 128, 128
      %27 = vsyncadd [#allocation6], %s26
      %s29 = sshll.u32 [#allocation5], 4
      %s30 = int_to_ptr.vmem [resolvable:$true] %s29
      %32 = dma.hbm_to_vmem [thread:$0]  %s1, 128, %s30, [#allocation6]
    $region9: #{linear_additive_forward.1} parent=1 // pred_fallthru
      _
    // Predicated region
    $region10: #{linear_additive_forward.1} parent=1 // pred_check
      _
    $region11: #{linear_additive_forward.1} parent=1 // pred_check_branch
      %34 = sbr.rel (0) target = $region13
    $region12: #{linear_additive_forward.1} parent=1 // pred_region
      %s36 = ssub.s32 4096, 4096
      %37 = vsyncadd [#allocation6], %s36
      %s38 = sshll.u32 [#allocation7], 4
      %s39 = int_to_ptr.vmem [resolvable:$true] %s38
      %44 = dma.hbm_to_vmem [thread:$0]  %s2, 4096, %s39, [#allocation6], 128, 128, 8
    $region13: #{linear_additive_forward.1} parent=1 // pred_fallthru
      _
    // Predicated region
    $region14: #{linear_additive_forward.1} parent=1 // pred_check
      _
    $region15: #{linear_additive_forward.1} parent=1 // pred_check_branch
      %46 = sbr.rel (0) target = $region17
    $region16: #{linear_additive_forward.1} parent=1 // pred_region
      %s48 = ssub.s32 32, 32
      %49 = vsyncadd [#allocation9], %s48
      %s51 = sshll.u32 [#allocation8], 4
      %s52 = int_to_ptr.vmem [resolvable:$true] %s51
      %54 = dma.hbm_to_vmem [thread:$0]  %s3, 32, %s52, [#allocation9]
    $region17: #{linear_additive_forward.1} parent=1 // pred_fallthru
      _
    // Predicated region
    $region18: #{linear_additive_forward.1} parent=1 // pred_check
      _
    $region19: #{linear_additive_forward.1} parent=1 // pred_check_branch
      %56 = sbr.rel (0) target = $region21
    $region20: #{linear_additive_forward.1} parent=1 // pred_region
      %57 = dma.done [#allocation3], 256
    $region21: #{linear_additive_forward.1} parent=1 // pred_fallthru
      _
    // Predicated region
    $region22: #{linear_additive_forward.1} parent=1 // pred_check
      _
    $region23: #{linear_additive_forward.1} parent=1 // pred_check_branch
      %59 = sbr.rel (0) target = $region25
    $region24: #{linear_additive_forward.1} parent=1 // pred_region
      %60 = dma.done [#allocation6], 128
    $region25: #{linear_additive_forward.1} parent=1 // pred_fallthru
      _
    // Predicated region
    $region26: #{linear_additive_forward.1} parent=1 // pred_check
      _
    $region27: #{linear_additive_forward.1} parent=1 // pred_check_branch
      %62 = sbr.rel (0) target = $region29
    $region28: #{linear_additive_forward.1} parent=1 // pred_region
      %63 = dma.done [#allocation6], 4096
    $region29: #{linear_additive_forward.1} parent=1 // pred_fallthru
      _
    // Predicated region
    $region30: #{linear_additive_forward.1} parent=1 // pred_check
      _
    $region31: #{linear_additive_forward.1} parent=1 // pred_check_branch
      %65 = sbr.rel (0) target = $region33
    $region32: #{linear_additive_forward.1} parent=1 // pred_region
      %66 = dma.done [#allocation9], 32
    $region33: #{linear_additive_forward.1} parent=1 // pred_fallthru
      _
    %v67 = vld [vmem:[#allocation5] sm:$0xff]
    %v68 = vld [vmem:[#allocation7] sm:$0xff]
    %v69 = vld [vmem:[#allocation7 + $0x8] sm:$0xff]
    %v70 = vld [vmem:[#allocation7 + $0x10] sm:$0xff]
    %v71 = vld [vmem:[#allocation7 + $0x18] sm:$0xff]
    %v72 = vld [vmem:[#allocation7 + $0x20] sm:$0xff]
    %v73 = vld [vmem:[#allocation7 + $0x28] sm:$0xff]
    %v74 = vld [vmem:[#allocation7 + $0x30] sm:$0xff]
    %v75 = vld [vmem:[#allocation7 + $0x38] sm:$0xff]
    %v76 = vld [vmem:[#allocation7 + $0x40] sm:$0xff]
    %v77 = vld [vmem:[#allocation7 + $0x48] sm:$0xff]
    %v78 = vld [vmem:[#allocation7 + $0x50] sm:$0xff]
    %v79 = vld [vmem:[#allocation7 + $0x58] sm:$0xff]
    %v80 = vld [vmem:[#allocation7 + $0x60] sm:$0xff]
    %v81 = vld [vmem:[#allocation7 + $0x68] sm:$0xff]
    %v82 = vld [vmem:[#allocation7 + $0x70] sm:$0xff]
    %v83 = vld [vmem:[#allocation7 + $0x78] sm:$0xff]
    %v84 = vld [vmem:[#allocation7 + $0x80] sm:$0xff]
    %v85 = vld [vmem:[#allocation7 + $0x88] sm:$0xff]
    %v86 = vld [vmem:[#allocation7 + $0x90] sm:$0xff]
    %v87 = vld [vmem:[#allocation7 + $0x98] sm:$0xff]
    %v88 = vld [vmem:[#allocation7 + $0xa0] sm:$0xff]
    %v89 = vld [vmem:[#allocation7 + $0xa8] sm:$0xff]
    %v90 = vld [vmem:[#allocation7 + $0xb0] sm:$0xff]
    %v91 = vld [vmem:[#allocation7 + $0xb8] sm:$0xff]
    %v92 = vld [vmem:[#allocation7 + $0xc0] sm:$0xff]
    %v93 = vld [vmem:[#allocation7 + $0xc8] sm:$0xff]
    %v94 = vld [vmem:[#allocation7 + $0xd0] sm:$0xff]
    %v95 = vld [vmem:[#allocation7 + $0xd8] sm:$0xff]
    %v96 = vld [vmem:[#allocation7 + $0xe0] sm:$0xff]
    %v97 = vld [vmem:[#allocation7 + $0xe8] sm:$0xff]
    %v98 = vld [vmem:[#allocation7 + $0xf0] sm:$0xff]
    %v99 = vld [vmem:[#allocation7 + $0xf8] sm:$0xff]
    %vm100 = vcmask 130048
    %v102 = vsel %vm100, %v67, 0
    %v105 = vsel %vm100, %v68, 0
    %v108 = vsel %vm100, %v69, 0
    %v111 = vsel %vm100, %v70, 0
    %v114 = vsel %vm100, %v71, 0
    %v117 = vsel %vm100, %v72, 0
    %v120 = vsel %vm100, %v73, 0
    %v123 = vsel %vm100, %v74, 0
    %v126 = vsel %vm100, %v75, 0
    %v129 = vsel %vm100, %v76, 0
    %v132 = vsel %vm100, %v77, 0
    %v135 = vsel %vm100, %v78, 0
    %v138 = vsel %vm100, %v79, 0
    %v141 = vsel %vm100, %v80, 0
    %v144 = vsel %vm100, %v81, 0
    %v147 = vsel %vm100, %v82, 0
    %v150 = vsel %vm100, %v83, 0
    %v153 = vsel %vm100, %v84, 0
    %v156 = vsel %vm100, %v85, 0
    %v159 = vsel %vm100, %v86, 0
    %v162 = vsel %vm100, %v87, 0
    %v165 = vsel %vm100, %v88, 0
    %v168 = vsel %vm100, %v89, 0
    %v171 = vsel %vm100, %v90, 0
    %v174 = vsel %vm100, %v91, 0
    %v177 = vsel %vm100, %v92, 0
    %v180 = vsel %vm100, %v93, 0
    %v183 = vsel %vm100, %v94, 0
    %v186 = vsel %vm100, %v95, 0
    %v189 = vsel %vm100, %v96, 0
    %v192 = vsel %vm100, %v97, 0
    %v195 = vsel %vm100, %v98, 0
    %v198 = vsel %vm100, %v99, 0
    %200 = vmatprep.subr.mxu0 0.0
    %201 = vmatpush1.xpose.msra.mxu0 %v105
    %202 = vmatprep.subr.mxu0 0.0
    %203 = vmatpush1.xpose.msra.mxu0 %v108
    %204 = vmatprep.subr.mxu0 0.0
    %205 = vmatpush1.xpose.msra.mxu0 %v111
    %206 = vmatprep.subr.mxu0 0.0
    %207 = vmatpush1.xpose.msra.mxu0 %v114
    %208 = vmatprep.subr.mxu0 0.0
    %209 = vmatpush1.xpose.msra.mxu0 %v117
    %210 = vmatprep.subr.mxu0 0.0
    %211 = vmatpush1.xpose.msra.mxu0 %v120
    %212 = vmatprep.subr.mxu0 0.0
    %213 = vmatpush1.xpose.msra.mxu0 %v123
    %214 = vmatprep.subr.mxu0 0.0
    %215 = vmatpush1.xpose.msra.mxu0 %v126
    %216 = vmatprep.subr.mxu0 0.0
    %217 = vmatpush1.xpose.msra.mxu0 %v129
    %218 = vmatprep.subr.mxu0 0.0
    %219 = vmatpush1.xpose.msra.mxu0 %v132
    %220 = vmatprep.subr.mxu0 0.0
    %221 = vmatpush1.xpose.msra.mxu0 %v135
    %222 = vmatprep.subr.mxu0 0.0
    %223 = vmatpush1.xpose.msra.mxu0 %v138
    %224 = vmatprep.subr.mxu0 0.0
    %225 = vmatpush1.xpose.msra.mxu0 %v141
    %226 = vmatprep.subr.mxu0 0.0
    %227 = vmatpush1.xpose.msra.mxu0 %v144
    %228 = vmatprep.subr.mxu0 0.0
    %229 = vmatpush1.xpose.msra.mxu0 %v147
    %230 = vmatprep.subr.mxu0 0.0
    %231 = vmatpush1.xpose.msra.mxu0 %v150
    %232 = vmatprep.subr.mxu0 0.0
    %233 = vmatpush1.xpose.msra.mxu0 %v153
    %234 = vmatprep.subr.mxu0 0.0
    %235 = vmatpush1.xpose.msra.mxu0 %v156
    %236 = vmatprep.subr.mxu0 0.0
    %237 = vmatpush1.xpose.msra.mxu0 %v159
    %238 = vmatprep.subr.mxu0 0.0
    %239 = vmatpush1.xpose.msra.mxu0 %v162
    %240 = vmatprep.subr.mxu0 0.0
    %241 = vmatpush1.xpose.msra.mxu0 %v165
    %242 = vmatprep.subr.mxu0 0.0
    %243 = vmatpush1.xpose.msra.mxu0 %v168
    %244 = vmatprep.subr.mxu0 0.0
    %245 = vmatpush1.xpose.msra.mxu0 %v171
    %246 = vmatprep.subr.mxu0 0.0
    %247 = vmatpush1.xpose.msra.mxu0 %v174
    %248 = vmatprep.subr.mxu0 0.0
    %249 = vmatpush1.xpose.msra.mxu0 %v177
    %250 = vmatprep.subr.mxu0 0.0
    %251 = vmatpush1.xpose.msra.mxu0 %v180
    %252 = vmatprep.subr.mxu0 0.0
    %253 = vmatpush1.xpose.msra.mxu0 %v183
    %254 = vmatprep.subr.mxu0 0.0
    %255 = vmatpush1.xpose.msra.mxu0 %v186
    %256 = vmatprep.subr.mxu0 0.0
    %257 = vmatpush1.xpose.msra.mxu0 %v189
    %258 = vmatprep.subr.mxu0 0.0
    %259 = vmatpush1.xpose.msra.mxu0 %v192
    %260 = vmatprep.subr.mxu0 0.0
    %261 = vmatpush1.xpose.msra.mxu0 %v195
    %262 = vmatprep.subr.mxu0 0.0
    %263 = vmatpush1.xpose.msra.mxu0 %v198
    %264 = vmatprep.mubr.f32.mxu0 0.0
    %265 = vmatmul.mubr.f32.gmra.mrb[0].mxu0 %v102
    %v266 = vpop.f32.mrb[0].mxu0
    %v267 = vadd.f32 0.0, %v266
    %v268 = vpop.f32.mrb[0].mxu0
    %v269 = vadd.f32 0.0, %v268
    %270 = vdwg.mxu0
    %v271 = vld [vmem:[#allocation2] sm:$0xff]
    %v272 = vld [vmem:[#allocation2 + $0x8] sm:$0xff]
    %v273 = vadd.f32 %v271, %v267
    %v274 = vadd.f32 %v272, %v269
    %v275 = vld [vmem:[#allocation8] sm:$0x3]
    %v277 = vlaneseq
    %v278 = vshrl.u32 %v277, 7
    %v279 = vsub.s32 0, %v278
    %v280 = vrot.slane %v275, %v279
    %v281 = vlaneseq
    %v282 = vshrl.u32 %v281, 7
    %v283 = vsub.s32 1, %v282
    %v284 = vrot.slane %v275, %v283
    %v287 = vadd.f32 %v273, %v280
    %v288 = vadd.f32 %v274, %v284
    %v289 = vmin.f32 %v287, 20.0
    %v290 = vmin.f32 %v288, 20.0
    %vm291 = vcmp.gt.f32.partialorder %v287, 20.0
    %vm292 = vcmp.gt.f32.partialorder %v288, 20.0
    %v293 = vmul.f32 %v289, 1.442695
    %v294 = vpow.pop %v293
    %v295 = vmul.f32 %v290, 1.442695
    %v296 = vpow.pop %v295
    %v297 = vadd.f32 %v294, 1.0
    %v298 = vlog2.pop %v297
    %v299 = vmul.f32 %v298, 0.6931472
    %v300 = vmul.f32 -0.5, %v294
    %v301 = vadd.f32 %v300, 1.0
    %v302 = vmul.f32 %v301, %v294
    %v303 = vand.u32 2147483647, %v294
    %vm304 = vcmp.lt.f32.partialorder %v303, 0.0004427343
    %v305 = vsel %vm304, %v302, %v299
    %v306 = vadd.f32 %v296, 1.0
    %v307 = vlog2.pop %v306
    %v308 = vmul.f32 %v307, 0.6931472
    %v309 = vmul.f32 -0.5, %v296
    %v310 = vadd.f32 %v309, 1.0
    %v311 = vmul.f32 %v310, %v296
    %v312 = vand.u32 2147483647, %v296
    %vm313 = vcmp.lt.f32.partialorder %v312, 0.0004427343
    %v314 = vsel %vm313, %v311, %v308
    %v315 = vsel %vm291, %v287, %v305
    %v316 = vsel %vm292, %v288, %v314
    %317 = vst [vmem:[#allocation10] sm:$0xff] %v315
    %318 = vst [vmem:[#allocation10 + $0x8] sm:$0xff] %v316
    // Predicated region
    $region34: #{linear_additive_forward.1} parent=1 // pred_check
      _
    $region35: #{linear_additive_forward.1} parent=1 // pred_check_branch
      %320 = sbr.rel (0) target = $region37
    $region36: #{linear_additive_forward.1} parent=1 // pred_region
      %s322 = ssub.s32 256, 256
      %323 = vsyncadd [#allocation4], %s322
      %s325 = sshll.u32 [#allocation10], 4
      %s326 = int_to_ptr.vmem [resolvable:$true] %s325
      %328 = dma.vmem_to_hbm [thread:$0]  %s326, 256, %s4, [#allocation4]
    $region37: #{linear_additive_forward.1} parent=1 // pred_fallthru
      _
    // Predicated region
    $region38: #{linear_additive_forward.1} parent=1 // pred_check
      _
    $region39: #{linear_additive_forward.1} parent=1 // pred_check_branch
      %330 = sbr.rel (0) target = $region41
    $region40: #{linear_additive_forward.1} parent=1 // pred_region
      %331 = dma.done [#allocation4], 256
    $region41: #{linear_additive_forward.1} parent=1 // pred_fallthru
      _
    %332 = vsyncpa [#allocation3], 1
    %333 = vsyncpa [#allocation6], 1
    %334 = vsyncpa [#allocation9], 1
    %335 = vsyncpa [#allocation4], 1

</llo_original>
